<compile_context>
chip_gen: v7x
topology: tpu7x:2x2x1
jax: 0.10.0
libtpu: 0.0.40
codegen_flags: <defaults>
</compile_context>

<pallas_src>
import jax
import jax.numpy as jnp
from jax.experimental import pallas as pl
from jax.experimental.pallas import tpu as pltpu

KERNEL_SIZE = 5
_LANE = 128
_SUBLANE = 8
_VMEM_BUDGET_BYTES = 8 * 1024 * 1024  # per buffer set; x2 double-buffered < 16 MiB


def _round_up(v, m):
    return (v + m - 1) // m * m


def _conv1d_relu_kernel(w_ref, b_ref, x_ref, o_ref):
    # w_ref: SMEM (KERNEL_SIZE,) f32, b_ref: SMEM (1,) f32
    # x_ref: VMEM (TN, L_in_pad) f32, o_ref: VMEM (TN, Lout_pad) f32
    x = x_ref[...]
    l_out = o_ref.shape[-1]
    # Hoist the tap scalar reads (SMEM) out of the unrolled accumulation.
    taps = [w_ref[k] for k in range(KERNEL_SIZE)]
    # Initialize the accumulator from tap 0 (no zeros materialization).
    acc = taps[0] * x[:, 0:l_out]
    for k in range(1, KERNEL_SIZE):
        acc = acc + taps[k] * x[:, k:k + l_out]
    acc = acc + b_ref[0]
    o_ref[...] = jnp.maximum(acc, 0.0)  # ReLU


def conv1d_relu(x_ncl, weight, bias, tn=None):
    """x_ncl: (N, 1, L) f32; weight: (1, 1, 5) f32; bias: (1,) f32 -> (N, 1, L_out)."""
    n, c, l = x_ncl.shape
    assert c == 1
    l_out = l - KERNEL_SIZE + 1
    assert l_out >= 1

    # Lane-dense padding: output width a multiple of 128; input width a
    # multiple of 128 that covers l_out + KERNEL_SIZE - 1 columns.
    lout_pad = _round_up(l_out, _LANE)
    l_in_pad = lout_pad + _LANE  # >= lout_pad + (KERNEL_SIZE - 1), lane aligned

    # Batch tile size: multiple of 8, sized against a conservative VMEM budget
    # (input + output block, double-buffered) so it is safe on v5e/v6e/v7x.
    if tn is None:
        bytes_per_row = (l_in_pad + lout_pad) * 4
        tn = (_VMEM_BUDGET_BYTES // (2 * bytes_per_row)) // _SUBLANE * _SUBLANE
        tn = int(max(_SUBLANE, min(tn, 512, _round_up(n, _SUBLANE))))
    else:
        tn = int(_round_up(max(tn, _SUBLANE), _SUBLANE))
    n_pad = _round_up(n, tn)

    x2d = x_ncl.reshape(n, l).astype(jnp.float32)
    x2d = jnp.pad(x2d, ((0, n_pad - n), (0, l_in_pad - l)))

    w = weight.reshape(KERNEL_SIZE).astype(jnp.float32)
    b = bias.reshape(1).astype(jnp.float32)

    out_padded = pl.pallas_call(
        _conv1d_relu_kernel,
        out_shape=jax.ShapeDtypeStruct((n_pad, lout_pad), jnp.float32),
        grid=(n_pad // tn,),
        in_specs=[
            pl.BlockSpec(memory_space=pltpu.MemorySpace.SMEM),  # weight taps
            pl.BlockSpec(memory_space=pltpu.MemorySpace.SMEM),  # bias
            pl.BlockSpec((tn, l_in_pad), lambda i: (i, 0)),     # batch-tiled input
        ],
        out_specs=pl.BlockSpec((tn, lout_pad), lambda i: (i, 0)),
        compiler_params=pltpu.CompilerParams(
            dimension_semantics=("parallel",)),
    )(w, b, x2d)

    # Slice off padded rows/columns (pad region holds relu(bias), not valid data).
    return out_padded[:n, :l_out].reshape(n, 1, l_out)


def reference(x_ncl, weight, bias):
    # Pure-JAX reference for correctness check (Conv1d + ReLU).
    n, _, l = x_ncl.shape
    l_out = l - KERNEL_SIZE + 1
    x2d = x_ncl.reshape(n, l)
    w = weight.reshape(KERNEL_SIZE)
    cols = jnp.stack([x2d[:, k:k + l_out] for k in range(KERNEL_SIZE)], axis=-1)
    y = jnp.einsum("nlk,k->nl", cols, w) + bias.reshape(())
    return jnp.maximum(y, 0.0).reshape(n, 1, l_out)


if __name__ == "__main__":
    key = jax.random.PRNGKey(0)
    kx, kw, kb, kx2 = jax.random.split(key, 4)

    # Deterministic parameter init (matches Conv1d(1, 1, 5) parameter shapes).
    fan_in = 1 * KERNEL_SIZE
    bound = 1.0 / (fan_in ** 0.5)
    weight = jax.random.uniform(kw, (1, 1, KERNEL_SIZE), jnp.float32, -bound, bound)
    bias = jax.random.uniform(kb, (1,), jnp.float32, -bound, bound)

    # Case 1: small shape consistent with Conv1d(1, 1, 5): x is (N, C=1, L).
    N, L = 2, 16
    x = jax.random.normal(kx, (N, 1, L), dtype=jnp.float32)
    out = jax.block_until_ready(conv1d_relu(x, weight, bias))
    ref = reference(x, weight, bias)
    assert out.shape == (N, 1, L - KERNEL_SIZE + 1)
    assert jnp.allclose(out, ref, atol=1e-5, rtol=1e-5)

    # Case 2: exercises a multi-step grid (batch tiling + padding + slice-back).
    N2, L2 = 20, 300
    x2 = jax.random.normal(kx2, (N2, 1, L2), dtype=jnp.float32)
    out2 = jax.block_until_ready(conv1d_relu(x2, weight, bias, tn=8))
    ref2 = reference(x2, weight, bias)
    assert out2.shape == (N2, 1, L2 - KERNEL_SIZE + 1)
    assert jnp.allclose(out2, ref2, atol=1e-5, rtol=1e-5)

    print("KERNEL_OK")
</pallas_src>

<mosaic_0001>
module attributes {stable_mosaic.version = 11 : i64} {
  func.func @_conv1d_relu_kernel(%arg0: i32, %arg1: memref<5xf32, #tpu.memory_space<smem>>, %arg2: memref<1xf32, #tpu.memory_space<smem>>, %arg3: memref<8x256xf32, #tpu.memory_space<vmem>>, %arg4: memref<8x128xf32, #tpu.memory_space<vmem>>) attributes {dimension_semantics = [#tpu.dimension_semantics<parallel>], iteration_bounds = array<i64: 1>, scalar_prefetch = 0 : i64, scratch_operands = 0 : i64, tpu.core_type = #tpu.core_type<tc>, window_params = [{transform_indices = @transform_0, window_bounds = array<i64: 5>}, {transform_indices = @transform_1, window_bounds = array<i64: 1>}, {transform_indices = @transform_2, window_bounds = array<i64: 8, 256>}, {transform_indices = @transform_3, window_bounds = array<i64: 8, 128>}]} {
    %c0 = arith.constant 0 : index
    %c0_0 = arith.constant 0 : index
    %0 = vector.load %arg3[%c0, %c0_0] : memref<8x256xf32, #tpu.memory_space<vmem>>, vector<8x256xf32>
    %c0_1 = arith.constant 0 : index
    %1 = memref.load %arg1[%c0_1] : memref<5xf32, #tpu.memory_space<smem>>
    %c1 = arith.constant 1 : index
    %2 = memref.load %arg1[%c1] : memref<5xf32, #tpu.memory_space<smem>>
    %c2 = arith.constant 2 : index
    %3 = memref.load %arg1[%c2] : memref<5xf32, #tpu.memory_space<smem>>
    %c3 = arith.constant 3 : index
    %4 = memref.load %arg1[%c3] : memref<5xf32, #tpu.memory_space<smem>>
    %c4 = arith.constant 4 : index
    %5 = memref.load %arg1[%c4] : memref<5xf32, #tpu.memory_space<smem>>
    %6 = vector.extract_strided_slice %0 {offsets = [0, 0], sizes = [8, 128], strides = [1, 1]} : vector<8x256xf32> to vector<8x128xf32>
    %7 = vector.broadcast %1 : f32 to vector<8x128xf32>
    %8 = arith.mulf %7, %6 : vector<8x128xf32>
    %9 = vector.extract_strided_slice %0 {offsets = [0, 1], sizes = [8, 128], strides = [1, 1]} : vector<8x256xf32> to vector<8x128xf32>
    %10 = vector.broadcast %2 : f32 to vector<8x128xf32>
    %11 = arith.mulf %10, %9 : vector<8x128xf32>
    %12 = arith.addf %8, %11 : vector<8x128xf32>
    %13 = vector.extract_strided_slice %0 {offsets = [0, 2], sizes = [8, 128], strides = [1, 1]} : vector<8x256xf32> to vector<8x128xf32>
    %14 = vector.broadcast %3 : f32 to vector<8x128xf32>
    %15 = arith.mulf %14, %13 : vector<8x128xf32>
    %16 = arith.addf %12, %15 : vector<8x128xf32>
    %17 = vector.extract_strided_slice %0 {offsets = [0, 3], sizes = [8, 128], strides = [1, 1]} : vector<8x256xf32> to vector<8x128xf32>
    %18 = vector.broadcast %4 : f32 to vector<8x128xf32>
    %19 = arith.mulf %18, %17 : vector<8x128xf32>
    %20 = arith.addf %16, %19 : vector<8x128xf32>
    %21 = vector.extract_strided_slice %0 {offsets = [0, 4], sizes = [8, 128], strides = [1, 1]} : vector<8x256xf32> to vector<8x128xf32>
    %22 = vector.broadcast %5 : f32 to vector<8x128xf32>
    %23 = arith.mulf %22, %21 : vector<8x128xf32>
    %24 = arith.addf %20, %23 : vector<8x128xf32>
    %c0_2 = arith.constant 0 : index
    %25 = memref.load %arg2[%c0_2] : memref<1xf32, #tpu.memory_space<smem>>
    %26 = vector.broadcast %25 : f32 to vector<8x128xf32>
    %27 = arith.addf %24, %26 : vector<8x128xf32>
    %cst = arith.constant 0.000000e+00 : f32
    %28 = vector.broadcast %cst : f32 to vector<8x128xf32>
    %29 = arith.maximumf %27, %28 : vector<8x128xf32>
    %c0_3 = arith.constant 0 : index
    %c0_4 = arith.constant 0 : index
    %30 = vector.load %arg4[%c0_3, %c0_4] : memref<8x128xf32, #tpu.memory_space<vmem>>, vector<8x128xf32>
    tpu.vector_store %arg4[%c0_3, %c0_4], %29 {strides = array<i32>} : memref<8x128xf32, #tpu.memory_space<vmem>>, vector<8x128xf32>,
    return
  }
  func.func @transform_0(%arg0: i32) -> i32 {
    %c0_i32 = arith.constant 0 : i32
    %c0_i32_0 = arith.constant 0 : i32
    return %c0_i32 : i32
  }
  func.func @transform_1(%arg0: i32) -> i32 {
    %c0_i32 = arith.constant 0 : i32
    %c0_i32_0 = arith.constant 0 : i32
    return %c0_i32 : i32
  }
  func.func @transform_2(%arg0: i32) -> (i32, i32) {
    %c0_i32 = arith.constant 0 : i32
    %c0_i32_0 = arith.constant 0 : i32
    return %arg0, %c0_i32 : i32, i32
  }
  func.func @transform_3(%arg0: i32) -> (i32, i32) {
    %c0_i32 = arith.constant 0 : i32
    %c0_i32_0 = arith.constant 0 : i32
    return %arg0, %c0_i32 : i32, i32
  }
}

</mosaic_0001>

<llo_original>
// kernel: tpu_custom_call.1
$region0: #{tpu_custom_call.1}
  #allocation0 [shape = 'u32[]', space=smem, size = 0x4, offset = 0x4, fixed_abs, tag = 'smem constant byte address 0x4 - core index']
  #allocation1 [shape = 'u32[144,128]{1,0:T(1,128)}', space=vmem, size = 0x12000, scoped, tag = 'internal scratch']
  #allocation2 [shape = 'f32[1]{0:T(128)S(6)}', space=smem, size = 0x200, scoped, tag = 'scoped memory for tpu_custom_call.1']
  %s0 = inlined_call_operand.vmem [shape: f32[5], index: 0, kind: input, shape index: {}]
  %s1 = inlined_call_operand.<no memory space> [shape: f32[1], index: 1, kind: input, shape index: {}]
  %s2 = inlined_call_operand.hbm [shape: f32[8,256], index: 2, kind: input, shape index: {}]
  %s3 = inlined_call_operand.hbm [shape: f32[8,128], index: 3, kind: output, shape index: {}]
  %s4 = sld [smem:[#allocation0]]
  $region30: #{tpu_custom_call.1} parent=0
    _
  %s6 = ssub.s32 1, %s4
  %s7 = scalar_select 0, %s6, %s4
  %8 = sst [smem:[#allocation2]] %s1
  $region1: #{tpu_custom_call.1} parent=0
    #allocation3 [shape = 'u8[512]{0}', space=smem, size = 0x200, scoped, tag = 'input window, operand 0, single buffered']
    #allocation4 [shape = 's32[1]{0}', space=sflag, size = 0x4, scoped, tag = 'scoped memory for tpu_custom_call.1']
    #allocation5 [shape = 's32[1]{0}', space=sflag, size = 0x4, scoped, tag = 'scoped memory for tpu_custom_call.1']
    #allocation6 [shape = 's32[1]{0}', space=sflag, size = 0x4, scoped, tag = 'scoped memory for tpu_custom_call.1']
    #allocation7 [shape = 'u8[8192]{0}', space=vmem, size = 0x2000, scoped, tag = 'input window, operand 2, single buffered']
    #allocation8 [shape = 'u8[4096]{0}', space=vmem, size = 0x1000, scoped, tag = 'output window, operand 0, single buffered']
    %9 = vsyncpa [#allocation6], 0
    %10 = vsyncpa [#allocation4], 0
    %11 = vsyncpa [#allocation5], 0
    // Predicated region
    $region2: #{tpu_custom_call.1} parent=1 // pred_check
      _
    $region3: #{tpu_custom_call.1} parent=1 // pred_check_branch
      %13 = sbr.rel (0) target = $region5
    $region4: #{tpu_custom_call.1} parent=1 // pred_region
      %s15 = ssub.s32 16, 16
      %16 = vsyncadd [#allocation6], %s15
      %s18 = sshll.u32 %s0, 4
      %s19 = int_to_ptr.vmem [resolvable:$true] %s18
      %21 = dma.vmem_to_smem %s19, 16, [#allocation3], [#allocation6]
    $region5: #{tpu_custom_call.1} parent=1 // pred_fallthru
      _
    // Predicated region
    $region6: #{tpu_custom_call.1} parent=1 // pred_check
      _
    $region7: #{tpu_custom_call.1} parent=1 // pred_check_branch
      %23 = sbr.rel (0) target = $region9
    $region8: #{tpu_custom_call.1} parent=1 // pred_region
      _
    $region9: #{tpu_custom_call.1} parent=1 // pred_fallthru
      _
    // Predicated region
    $region10: #{tpu_custom_call.1} parent=1 // pred_check
      _
    $region11: #{tpu_custom_call.1} parent=1 // pred_check_branch
      %25 = sbr.rel (0) target = $region13
    $region12: #{tpu_custom_call.1} parent=1 // pred_region
      %s27 = ssub.s32 256, 256
      %28 = vsyncadd [#allocation4], %s27
      %s30 = sshll.u32 [#allocation7], 4
      %s31 = int_to_ptr.vmem [resolvable:$true] %s30
      %33 = dma.hbm_to_vmem [thread:$0]  %s2, 256, %s31, [#allocation4]
    $region13: #{tpu_custom_call.1} parent=1 // pred_fallthru
      _
    // Predicated region
    $region14: #{tpu_custom_call.1} parent=1 // pred_check
      _
    $region15: #{tpu_custom_call.1} parent=1 // pred_check_branch
      %35 = sbr.rel (0) target = $region17
    $region16: #{tpu_custom_call.1} parent=1 // pred_region
      %36 = dma.done [#allocation6], 16
    $region17: #{tpu_custom_call.1} parent=1 // pred_fallthru
      _
    // Predicated region
    $region18: #{tpu_custom_call.1} parent=1 // pred_check
      _
    $region19: #{tpu_custom_call.1} parent=1 // pred_check_branch
      %38 = sbr.rel (0) target = $region21
    $region20: #{tpu_custom_call.1} parent=1 // pred_region
      %39 = dma.done [#allocation4], 256
    $region21: #{tpu_custom_call.1} parent=1 // pred_fallthru
      _
    %40 = sfence
    %v41 = vld [vmem:[#allocation7] sm:$0xff]
    %v42 = vld [vmem:[#allocation7 + $0x8] sm:$0xff]
    %s43 = sld [smem:[#allocation3]]
    %s44 = sld [smem:[#allocation3 + $0x1]]
    %s45 = sld [smem:[#allocation3 + $0x2]]
    %s46 = sld [smem:[#allocation3 + $0x3]]
    %s47 = sld [smem:[#allocation3 + $0x4]]
    %v48 = vstv %s43
    %v49 = vmul.f32 %v48, %v41
    %v50 = vstv %s44
    %v51 = vmul.f32 %v50, %v41
    %v52 = vmul.f32 %v50, %v42
    %55 = vrot.lane.b32.xlu0 %v51, 127
    %v56 = vpop.permute.xlu0 %55
    %57 = vrot.lane.b32.xlu0 %v52, 127
    %v58 = vpop.permute.xlu0 %57
    %vm59 = vcmask 1039360
    %v60 = vsel %vm59, %v56, %v58
    %v62 = vadd.f32 %v49, %v60
    %v63 = vstv %s45
    %v64 = vmul.f32 %v63, %v41
    %v65 = vmul.f32 %v63, %v42
    %68 = vrot.lane.b32.xlu0 %v64, 126
    %v69 = vpop.permute.xlu0 %68
    %70 = vrot.lane.b32.xlu0 %v65, 126
    %v71 = vpop.permute.xlu0 %70
    %vm72 = vcmask 1031168
    %v73 = vsel %vm72, %v69, %v71
    %v75 = vadd.f32 %v62, %v73
    %v76 = vstv %s46
    %v77 = vmul.f32 %v76, %v41
    %v78 = vmul.f32 %v76, %v42
    %81 = vrot.lane.b32.xlu0 %v77, 125
    %v82 = vpop.permute.xlu0 %81
    %83 = vrot.lane.b32.xlu0 %v78, 125
    %v84 = vpop.permute.xlu0 %83
    %vm85 = vcmask 1022976
    %v86 = vsel %vm85, %v82, %v84
    %v88 = vadd.f32 %v75, %v86
    %v89 = vstv %s47
    %v90 = vmul.f32 %v89, %v41
    %v91 = vmul.f32 %v89, %v42
    %94 = vrot.lane.b32.xlu0 %v90, 124
    %v95 = vpop.permute.xlu0 %94
    %96 = vrot.lane.b32.xlu0 %v91, 124
    %v97 = vpop.permute.xlu0 %96
    %vm98 = vcmask 1014784
    %v99 = vsel %vm98, %v95, %v97
    %v101 = vadd.f32 %v88, %v99
    %s102 = sld [smem:[#allocation2]]
    %v103 = vstv %s102
    %v104 = vadd.f32 %v101, %v103
    %v105 = vmax.f32 %v104, 0.0
    %106 = vst [vmem:[#allocation8] sm:$0xff] %v105
    // Predicated region
    $region22: #{tpu_custom_call.1} parent=1 // pred_check
      _
    $region23: #{tpu_custom_call.1} parent=1 // pred_check_branch
      %108 = sbr.rel (0) target = $region25
    $region24: #{tpu_custom_call.1} parent=1 // pred_region
      %s110 = ssub.s32 128, 128
      %111 = vsyncadd [#allocation5], %s110
      %s113 = sshll.u32 [#allocation8], 4
      %s114 = int_to_ptr.vmem [resolvable:$true] %s113
      %116 = dma.vmem_to_hbm [thread:$0]  %s114, 128, %s3, [#allocation5]
    $region25: #{tpu_custom_call.1} parent=1 // pred_fallthru
      _
    // Predicated region
    $region26: #{tpu_custom_call.1} parent=1 // pred_check
      _
    $region27: #{tpu_custom_call.1} parent=1 // pred_check_branch
      %118 = sbr.rel (0) target = $region29
    $region28: #{tpu_custom_call.1} parent=1 // pred_region
      %119 = dma.done [#allocation5], 128
    $region29: #{tpu_custom_call.1} parent=1 // pred_fallthru
      _
    %120 = vsyncpa [#allocation4], 1
    %121 = vsyncpa [#allocation5], 1
    %122 = vsyncpa [#allocation6], 1

</llo_original>
